<compile_context>
chip_gen: v7x
topology: tpu7x:2x2x1
jax: 0.10.0
libtpu: 0.0.40
codegen_flags: <defaults>
</compile_context>

<pallas_src>
import jax
import jax.numpy as jnp
from jax import lax
from jax.experimental import pallas as pl
from jax.experimental.pallas import tpu as pltpu

LANE = 128
SUBLANE = 8


def _wcp_kernel(n_ref, pred_ref, gt_ref, out_ref, acc_pos, acc_neg, acc_y):
    i = pl.program_id(0)
    tile_rows = pred_ref.shape[0]

    @pl.when(i == 0)
    def _():
        acc_pos[...] = jnp.zeros_like(acc_pos)
        acc_neg[...] = jnp.zeros_like(acc_neg)
        acc_y[...] = jnp.zeros_like(acc_y)

    n = n_ref[0]

    # Mask for the ragged tail: global flat element index vs. true count N.
    row = lax.broadcasted_iota(jnp.int32, (tile_rows, LANE), 0)
    col = lax.broadcasted_iota(jnp.int32, (tile_rows, LANE), 1)
    idx = (i * tile_rows + row) * LANE + col
    valid = idx < n

    # Guard against unspecified data in partial / padded regions, then cast.
    x = jnp.where(valid, pred_ref[...].astype(jnp.float32), 0.0)
    y = jnp.where(valid, gt_ref[...].astype(jnp.float32), 0.0)

    # Shared transcendentals for softplus(x) and softplus(-x):
    #   log sigmoid(x)      = -softplus(-x) =  min(x, 0) - log1p(exp(-|x|))
    #   log(1 - sigmoid(x)) = -softplus(x)  = -max(x, 0) - log1p(exp(-|x|))
    lp = jnp.log1p(jnp.exp(-jnp.abs(x)))
    log_sig_pos = jnp.minimum(x, 0.0) - lp
    log_sig_neg = -jnp.maximum(x, 0.0) - lp

    t_pos = y * log_sig_pos                                   # y==0 when invalid
    t_neg = jnp.where(valid, (1.0 - y) * log_sig_neg, 0.0)

    # Per-lane accumulation: reduce the tile to (8,128) with cross-vreg adds
    # (tile layout preserved by the reshape) and add into the VMEM scratch.
    r = tile_rows // SUBLANE
    acc_pos[...] += t_pos.reshape(r, SUBLANE, LANE).sum(axis=0)
    acc_neg[...] += t_neg.reshape(r, SUBLANE, LANE).sum(axis=0)
    acc_y[...] += y.reshape(r, SUBLANE, LANE).sum(axis=0)

    @pl.when(i == pl.num_programs(0) - 1)
    def _():
        eps = jnp.float32(1e-10)
        nf = n.astype(jnp.float32)
        s_pos = jnp.sum(acc_pos[...])
        s_neg = jnp.sum(acc_neg[...])
        s_y = jnp.sum(acc_y[...])
        count_pos = s_y + eps                  # sum(gt) + eps
        count_neg = nf - s_y                   # sum(1 - gt)
        beta = count_neg / count_pos
        beta_back = count_pos / (count_pos + count_neg)
        mean_loss = -(beta * s_pos + s_neg) / nf
        out_ref[0, 0] = beta_back * mean_loss


def wcp_loss(pred, gt, *, tile_rows=512):
    n = pred.size
    p = pred.reshape(-1)          # native dtype; cast happens in-kernel
    g = gt.reshape(-1)

    # Pad only to a multiple of 8*128 elements (needed for the (rows, 128)
    # reshape / 8-row tiling).  For typical CNN shapes this is a no-op; padded
    # elements are masked in-kernel (idx >= n), so the pad value is irrelevant.
    block_elems = SUBLANE * LANE
    pad = (-n) % block_elems
    if pad:
        p = jnp.concatenate([p, jnp.zeros((pad,), p.dtype)])
        g = jnp.concatenate([g, jnp.zeros((pad,), g.dtype)])

    rows = p.size // LANE
    p2 = p.reshape(rows, LANE)
    g2 = g.reshape(rows, LANE)

    # Clamp the tile to the actual row count (both multiples of 8).
    tr = min(tile_rows, rows)
    grid = pl.cdiv(rows, tr)
    n_arr = jnp.array([n], dtype=jnp.int32)

    out = pl.pallas_call(
        _wcp_kernel,
        out_shape=jax.ShapeDtypeStruct((1, 1), jnp.float32),
        grid_spec=pltpu.PrefetchScalarGridSpec(
            num_scalar_prefetch=1,
            grid=(grid,),
            in_specs=[
                pl.BlockSpec((tr, LANE), lambda i, n_ref: (i, 0)),
                pl.BlockSpec((tr, LANE), lambda i, n_ref: (i, 0)),
            ],
            out_specs=pl.BlockSpec(memory_space=pltpu.MemorySpace.SMEM),
            scratch_shapes=[
                pltpu.VMEM((SUBLANE, LANE), jnp.float32),   # sum y*log σ(x)
                pltpu.VMEM((SUBLANE, LANE), jnp.float32),   # sum (1-y)*log(1-σ(x))
                pltpu.VMEM((SUBLANE, LANE), jnp.float32),   # sum y
            ],
        ),
        compiler_params=pltpu.CompilerParams(
            dimension_semantics=("arbitrary",)),
    )(n_arr, p2, g2)
    return out[0, 0]


def wcp_loss_ref(pred, gt):
    # pure-JAX reference mirroring the PyTorch module
    eps = 1e-10
    count_pos = jnp.sum(gt) + eps
    count_neg = jnp.sum(1.0 - gt)
    beta = count_neg / count_pos
    beta_back = count_pos / (count_pos + count_neg)
    x, y = pred, gt
    sp = lambda z: jnp.maximum(z, 0.0) + jnp.log1p(jnp.exp(-jnp.abs(z)))
    elem = -(beta * y * (-sp(-x)) + (1.0 - y) * (-sp(x)))
    return beta_back * jnp.mean(elem)


if __name__ == "__main__":
    key = jax.random.PRNGKey(0)
    k1, k2 = jax.random.split(key)
    pred = jax.random.normal(k1, (2, 4, 16, 16), jnp.float32)       # logits
    gt = (jax.random.uniform(k2, (2, 4, 16, 16)) > 0.5).astype(jnp.float32)

    loss = jax.block_until_ready(wcp_loss(pred, gt))
    ref = wcp_loss_ref(pred, gt)
    assert jnp.allclose(loss, ref, rtol=1e-5, atol=1e-6), (loss, ref)
    print("KERNEL_OK")
</pallas_src>

<mosaic_0001>
module attributes {stable_mosaic.version = 11 : i64} {
  func.func @_wcp_kernel(%arg0: i32, %arg1: memref<1xi32, #tpu.memory_space<smem>>, %arg2: memref<16x128xf32, #tpu.memory_space<vmem>>, %arg3: memref<16x128xf32, #tpu.memory_space<vmem>>, %arg4: memref<1x1xf32, #tpu.memory_space<smem>>, %arg5: memref<8x128xf32, #tpu.memory_space<vmem>>, %arg6: memref<8x128xf32, #tpu.memory_space<vmem>>, %arg7: memref<8x128xf32, #tpu.memory_space<vmem>>) attributes {dimension_semantics = [#tpu.dimension_semantics<arbitrary>], iteration_bounds = array<i64: 1>, scalar_prefetch = 1 : i64, scratch_operands = 3 : i64, tpu.core_type = #tpu.core_type<tc>, window_params = [{transform_indices = @transform_0, window_bounds = array<i64: 16, 128>}, {transform_indices = @transform_1, window_bounds = array<i64: 16, 128>}, {transform_indices = @transform_2, window_bounds = array<i64: 1, 1>}]} {
    %c0_i32 = arith.constant 0 : i32
    %0 = arith.cmpi eq, %arg0, %c0_i32 : i32
    %1 = arith.extui %0 : i1 to i32
    %c0_i32_0 = arith.constant 0 : i32
    %2 = arith.cmpi ne, %1, %c0_i32_0 : i32
    scf.if %2 {
      %cst_29 = arith.constant 0.000000e+00 : f32
      %57 = vector.broadcast %cst_29 : f32 to vector<8x128xf32>
      %c0_30 = arith.constant 0 : index
      %c0_31 = arith.constant 0 : index
      %58 = vector.load %arg5[%c0_30, %c0_31] : memref<8x128xf32, #tpu.memory_space<vmem>>, vector<8x128xf32>
      tpu.vector_store %arg5[%c0_30, %c0_31], %57 {strides = array<i32>} : memref<8x128xf32, #tpu.memory_space<vmem>>, vector<8x128xf32>,
      %cst_32 = arith.constant 0.000000e+00 : f32
      %59 = vector.broadcast %cst_32 : f32 to vector<8x128xf32>
      %c0_33 = arith.constant 0 : index
      %c0_34 = arith.constant 0 : index
      %60 = vector.load %arg6[%c0_33, %c0_34] : memref<8x128xf32, #tpu.memory_space<vmem>>, vector<8x128xf32>
      tpu.vector_store %arg6[%c0_33, %c0_34], %59 {strides = array<i32>} : memref<8x128xf32, #tpu.memory_space<vmem>>, vector<8x128xf32>,
      %cst_35 = arith.constant 0.000000e+00 : f32
      %61 = vector.broadcast %cst_35 : f32 to vector<8x128xf32>
      %c0_36 = arith.constant 0 : index
      %c0_37 = arith.constant 0 : index
      %62 = vector.load %arg7[%c0_36, %c0_37] : memref<8x128xf32, #tpu.memory_space<vmem>>, vector<8x128xf32>
      tpu.vector_store %arg7[%c0_36, %c0_37], %61 {strides = array<i32>} : memref<8x128xf32, #tpu.memory_space<vmem>>, vector<8x128xf32>,
    } else {
    }
    %c0 = arith.constant 0 : index
    %3 = memref.load %arg1[%c0] : memref<1xi32, #tpu.memory_space<smem>>
    %4 = tpu.iota {dimensions = array<i32: 0>} : vector<16x128xi32>
    %5 = tpu.iota {dimensions = array<i32: 1>} : vector<16x128xi32>
    %c16_i32 = arith.constant 16 : i32
    %6 = arith.muli %arg0, %c16_i32 : i32
    %7 = vector.broadcast %6 : i32 to vector<16x128xi32>
    %8 = arith.addi %7, %4 : vector<16x128xi32>
    %c128_i32 = arith.constant 128 : i32
    %9 = vector.broadcast %c128_i32 : i32 to vector<16x128xi32>
    %10 = arith.muli %8, %9 : vector<16x128xi32>
    %11 = arith.addi %10, %5 : vector<16x128xi32>
    %12 = vector.broadcast %3 : i32 to vector<16x128xi32>
    %13 = arith.cmpi slt, %11, %12 : vector<16x128xi32>
    %c0_1 = arith.constant 0 : index
    %c0_2 = arith.constant 0 : index
    %14 = vector.load %arg2[%c0_1, %c0_2] : memref<16x128xf32, #tpu.memory_space<vmem>>, vector<16x128xf32>
    %cst = arith.constant 0.000000e+00 : f32
    %15 = vector.broadcast %cst : f32 to vector<16x128xf32>
    %16 = arith.select %13, %14, %15 : vector<16x128xi1>, vector<16x128xf32>
    %c0_3 = arith.constant 0 : index
    %c0_4 = arith.constant 0 : index
    %17 = vector.load %arg3[%c0_3, %c0_4] : memref<16x128xf32, #tpu.memory_space<vmem>>, vector<16x128xf32>
    %cst_5 = arith.constant 0.000000e+00 : f32
    %18 = vector.broadcast %cst_5 : f32 to vector<16x128xf32>
    %19 = arith.select %13, %17, %18 : vector<16x128xi1>, vector<16x128xf32>
    %20 = math.absf %16 : vector<16x128xf32>
    %cst_6 = arith.constant 0.000000e+00 : f32
    %21 = vector.broadcast %cst_6 : f32 to vector<16x128xf32>
    %22 = arith.subf %21, %20 : vector<16x128xf32>
    %23 = math.exp %22 : vector<16x128xf32>
    %24 = math.log1p %23 : vector<16x128xf32>
    %cst_7 = arith.constant 0.000000e+00 : f32
    %25 = vector.broadcast %cst_7 : f32 to vector<16x128xf32>
    %26 = arith.minimumf %16, %25 : vector<16x128xf32>
    %27 = arith.subf %26, %24 : vector<16x128xf32>
    %cst_8 = arith.constant 0.000000e+00 : f32
    %28 = vector.broadcast %cst_8 : f32 to vector<16x128xf32>
    %29 = arith.maximumf %16, %28 : vector<16x128xf32>
    %cst_9 = arith.constant 0.000000e+00 : f32
    %30 = vector.broadcast %cst_9 : f32 to vector<16x128xf32>
    %31 = arith.subf %30, %29 : vector<16x128xf32>
    %32 = arith.subf %31, %24 : vector<16x128xf32>
    %33 = arith.mulf %19, %27 : vector<16x128xf32>
    %cst_10 = arith.constant 1.000000e+00 : f32
    %34 = vector.broadcast %cst_10 : f32 to vector<16x128xf32>
    %35 = arith.subf %34, %19 : vector<16x128xf32>
    %36 = arith.mulf %35, %32 : vector<16x128xf32>
    %cst_11 = arith.constant 0.000000e+00 : f32
    %37 = vector.broadcast %cst_11 : f32 to vector<16x128xf32>
    %38 = arith.select %13, %36, %37 : vector<16x128xi1>, vector<16x128xf32>
    %c0_12 = arith.constant 0 : index
    %c0_13 = arith.constant 0 : index
    %39 = vector.load %arg5[%c0_12, %c0_13] : memref<8x128xf32, #tpu.memory_space<vmem>>, vector<8x128xf32>
    %40 = vector.shape_cast %33 : vector<16x128xf32> to vector<2x8x128xf32>
    %cst_14 = arith.constant dense<0.000000e+00> : vector<8x128xf32>
    %41 = vector.multi_reduction <add>, %40, %cst_14 [0] : vector<2x8x128xf32> to vector<8x128xf32>
    %42 = arith.addf %39, %41 : vector<8x128xf32>
    %c0_15 = arith.constant 0 : index
    %c0_16 = arith.constant 0 : index
    %43 = vector.load %arg5[%c0_15, %c0_16] : memref<8x128xf32, #tpu.memory_space<vmem>>, vector<8x128xf32>
    tpu.vector_store %arg5[%c0_15, %c0_16], %42 {strides = array<i32>} : memref<8x128xf32, #tpu.memory_space<vmem>>, vector<8x128xf32>,
    %c0_17 = arith.constant 0 : index
    %c0_18 = arith.constant 0 : index
    %44 = vector.load %arg6[%c0_17, %c0_18] : memref<8x128xf32, #tpu.memory_space<vmem>>, vector<8x128xf32>
    %45 = vector.shape_cast %38 : vector<16x128xf32> to vector<2x8x128xf32>
    %cst_19 = arith.constant dense<0.000000e+00> : vector<8x128xf32>
    %46 = vector.multi_reduction <add>, %45, %cst_19 [0] : vector<2x8x128xf32> to vector<8x128xf32>
    %47 = arith.addf %44, %46 : vector<8x128xf32>
    %c0_20 = arith.constant 0 : index
    %c0_21 = arith.constant 0 : index
    %48 = vector.load %arg6[%c0_20, %c0_21] : memref<8x128xf32, #tpu.memory_space<vmem>>, vector<8x128xf32>
    tpu.vector_store %arg6[%c0_20, %c0_21], %47 {strides = array<i32>} : memref<8x128xf32, #tpu.memory_space<vmem>>, vector<8x128xf32>,
    %c0_22 = arith.constant 0 : index
    %c0_23 = arith.constant 0 : index
    %49 = vector.load %arg7[%c0_22, %c0_23] : memref<8x128xf32, #tpu.memory_space<vmem>>, vector<8x128xf32>
    %50 = vector.shape_cast %19 : vector<16x128xf32> to vector<2x8x128xf32>
    %cst_24 = arith.constant dense<0.000000e+00> : vector<8x128xf32>
    %51 = vector.multi_reduction <add>, %50, %cst_24 [0] : vector<2x8x128xf32> to vector<8x128xf32>
    %52 = arith.addf %49, %51 : vector<8x128xf32>
    %c0_25 = arith.constant 0 : index
    %c0_26 = arith.constant 0 : index
    %53 = vector.load %arg7[%c0_25, %c0_26] : memref<8x128xf32, #tpu.memory_space<vmem>>, vector<8x128xf32>
    tpu.vector_store %arg7[%c0_25, %c0_26], %52 {strides = array<i32>} : memref<8x128xf32, #tpu.memory_space<vmem>>, vector<8x128xf32>,
    %c0_i32_27 = arith.constant 0 : i32
    %54 = arith.cmpi eq, %arg0, %c0_i32_27 : i32
    %55 = arith.extui %54 : i1 to i32
    %c0_i32_28 = arith.constant 0 : i32
    %56 = arith.cmpi ne, %55, %c0_i32_28 : i32
    scf.if %56 {
      %57 = arith.sitofp %3 : i32 to f32
      %c0_29 = arith.constant 0 : index
      %c0_30 = arith.constant 0 : index
      %58 = vector.load %arg5[%c0_29, %c0_30] : memref<8x128xf32, #tpu.memory_space<vmem>>, vector<8x128xf32>
      %59 = vector.shape_cast %58 : vector<8x128xf32> to vector<1x8x128xf32>
      %cst_31 = arith.constant dense<0.000000e+00> : vector<1xf32>
      %60 = vector.multi_reduction <add>, %59, %cst_31 [1, 2] : vector<1x8x128xf32> to vector<1xf32>
      %61 = vector.shape_cast %60 : vector<1xf32> to vector<1x1x1xf32>
      %62 = vector.extract %61[0, 0, 0] : f32 from vector<1x1x1xf32>
      %c0_32 = arith.constant 0 : index
      %c0_33 = arith.constant 0 : index
      %63 = vector.load %arg6[%c0_32, %c0_33] : memref<8x128xf32, #tpu.memory_space<vmem>>, vector<8x128xf32>
      %64 = vector.shape_cast %63 : vector<8x128xf32> to vector<1x8x128xf32>
      %cst_34 = arith.constant dense<0.000000e+00> : vector<1xf32>
      %65 = vector.multi_reduction <add>, %64, %cst_34 [1, 2] : vector<1x8x128xf32> to vector<1xf32>
      %66 = vector.shape_cast %65 : vector<1xf32> to vector<1x1x1xf32>
      %67 = vector.extract %66[0, 0, 0] : f32 from vector<1x1x1xf32>
      %c0_35 = arith.constant 0 : index
      %c0_36 = arith.constant 0 : index
      %68 = vector.load %arg7[%c0_35, %c0_36] : memref<8x128xf32, #tpu.memory_space<vmem>>, vector<8x128xf32>
      %69 = vector.shape_cast %68 : vector<8x128xf32> to vector<1x8x128xf32>
      %cst_37 = arith.constant dense<0.000000e+00> : vector<1xf32>
      %70 = vector.multi_reduction <add>, %69, %cst_37 [1, 2] : vector<1x8x128xf32> to vector<1xf32>
      %71 = vector.shape_cast %70 : vector<1xf32> to vector<1x1x1xf32>
      %72 = vector.extract %71[0, 0, 0] : f32 from vector<1x1x1xf32>
      %cst_38 = arith.constant 1.000000e-10 : f32
      %73 = arith.addf %72, %cst_38 : f32
      %74 = arith.subf %57, %72 : f32
      %75 = arith.divf %74, %73 : f32
      %76 = arith.addf %73, %74 : f32
      %77 = arith.divf %73, %76 : f32
      %78 = arith.mulf %75, %62 : f32
      %79 = arith.addf %78, %67 : f32
      %cst_39 = arith.constant 0.000000e+00 : f32
      %80 = arith.subf %cst_39, %79 : f32
      %81 = arith.divf %80, %57 : f32
      %82 = arith.mulf %77, %81 : f32
      %c0_40 = arith.constant 0 : index
      %c0_41 = arith.constant 0 : index
      %83 = memref.load %arg4[%c0_40, %c0_41] : memref<1x1xf32, #tpu.memory_space<smem>>
      memref.store %82, %arg4[%c0_40, %c0_41] : memref<1x1xf32, #tpu.memory_space<smem>>
    } else {
    }
    return
  }
  func.func @transform_0(%arg0: i32, %arg1: memref<1xi32, #tpu.memory_space<smem>>) -> (i32, i32) {
    %c0_i32 = arith.constant 0 : i32
    %c0_i32_0 = arith.constant 0 : i32
    return %arg0, %c0_i32 : i32, i32
  }
  func.func @transform_1(%arg0: i32, %arg1: memref<1xi32, #tpu.memory_space<smem>>) -> (i32, i32) {
    %c0_i32 = arith.constant 0 : i32
    %c0_i32_0 = arith.constant 0 : i32
    return %arg0, %c0_i32 : i32, i32
  }
  func.func @transform_2(%arg0: i32, %arg1: memref<1xi32, #tpu.memory_space<smem>>) -> (i32, i32) {
    %c0_i32 = arith.constant 0 : i32
    %c0_i32_0 = arith.constant 0 : i32
    %c0_i32_1 = arith.constant 0 : i32
    return %c0_i32, %c0_i32_0 : i32, i32
  }
}

</mosaic_0001>

<llo_original>
// kernel: tpu_custom_call.1
$region0: #{tpu_custom_call.1}
  #allocation0 [shape = 'u32[]', space=smem, size = 0x4, offset = 0x4, fixed_abs, tag = 'smem constant byte address 0x4 - core index']
  #allocation1 [shape = 'u32[144,128]{1,0:T(1,128)}', space=vmem, size = 0x12000, scoped, tag = 'internal scratch']
  #allocation2 [shape = 'f32[8,128]{1,0:T(8,128)}', space=vmem, size = 0x1000, scoped, tag = 'scratch operand']
  #allocation3 [shape = 'f32[8,128]{1,0:T(8,128)}', space=vmem, size = 0x1000, scoped, tag = 'scratch operand']
  #allocation4 [shape = 'f32[8,128]{1,0:T(8,128)}', space=vmem, size = 0x1000, scoped, tag = 'scratch operand']
  #allocation5 [shape = 's32[1]{0}', space=sflag, size = 0x4, scoped, tag = 'scoped memory for tpu_custom_call.1']
  #allocation6 [shape = 's32[1]{0:T(128)S(6)}', space=smem, size = 0x200, scoped, tag = 'prefetched SMEM operand 0']
  %s0 = inlined_call_operand.<no memory space> [shape: s32[1], index: 0, kind: input, shape index: {}]
  %s1 = inlined_call_operand.hbm [shape: f32[16,128], index: 1, kind: input, shape index: {}]
  %s2 = inlined_call_operand.hbm [shape: f32[16,128], index: 2, kind: input, shape index: {}]
  %s3 = inlined_call_operand.hbm [shape: f32[1,1], index: 3, kind: output, shape index: {}]
  %s4 = sld [smem:[#allocation0]]
  $region34: #{tpu_custom_call.1} parent=0
    _
  %s6 = ssub.s32 1, %s4
  %s7 = scalar_select 0, %s6, %s4
  %8 = sst [smem:[#allocation6]] %s0
  $region1: #{tpu_custom_call.1} parent=0
    #allocation7 [shape = 'u8[8192]{0}', space=vmem, size = 0x2000, scoped, tag = 'input window, operand 1, single buffered']
    #allocation8 [shape = 's32[1]{0}', space=sflag, size = 0x4, scoped, tag = 'scoped memory for tpu_custom_call.1']
    #allocation9 [shape = 's32[1]{0}', space=sflag, size = 0x4, scoped, tag = 'scoped memory for tpu_custom_call.1']
    #allocation10 [shape = 'u8[8192]{0}', space=vmem, size = 0x2000, scoped, tag = 'input window, operand 2, single buffered']
    #allocation11 [shape = 's32[1]{0}', space=sflag, size = 0x4, scoped, tag = 'scoped memory for tpu_custom_call.1']
    #allocation12 [shape = 'u8[512]{0}', space=smem, size = 0x200, scoped, tag = 'output window, operand 0, single buffered']
    %9 = vsyncpa [#allocation8], 0
    %10 = vsyncpa [#allocation11], 0
    %11 = vsyncpa [#allocation9], 0
    // Predicated region
    $region2: #{tpu_custom_call.1} parent=1 // pred_check
      _
    $region3: #{tpu_custom_call.1} parent=1 // pred_check_branch
      %13 = sbr.rel (0) target = $region5
    $region4: #{tpu_custom_call.1} parent=1 // pred_region
      %s15 = ssub.s32 256, 256
      %16 = vsyncadd [#allocation8], %s15
      %s17 = sshll.u32 [#allocation7], 4
      %s18 = int_to_ptr.vmem [resolvable:$true] %s17
      %23 = dma.hbm_to_vmem [thread:$0]  %s1, 256, %s18, [#allocation8], 128, 128, 8
    $region5: #{tpu_custom_call.1} parent=1 // pred_fallthru
      _
    // Predicated region
    $region6: #{tpu_custom_call.1} parent=1 // pred_check
      _
    $region7: #{tpu_custom_call.1} parent=1 // pred_check_branch
      %25 = sbr.rel (0) target = $region9
    $region8: #{tpu_custom_call.1} parent=1 // pred_region
      %s27 = ssub.s32 256, 256
      %28 = vsyncadd [#allocation11], %s27
      %s29 = sshll.u32 [#allocation10], 4
      %s30 = int_to_ptr.vmem [resolvable:$true] %s29
      %35 = dma.hbm_to_vmem [thread:$0]  %s2, 256, %s30, [#allocation11], 128, 128, 8
    $region9: #{tpu_custom_call.1} parent=1 // pred_fallthru
      _
    // Predicated region
    $region10: #{tpu_custom_call.1} parent=1 // pred_check
      _
    $region11: #{tpu_custom_call.1} parent=1 // pred_check_branch
      %37 = sbr.rel (0) target = $region13
    $region12: #{tpu_custom_call.1} parent=1 // pred_region
      %38 = dma.done [#allocation8], 256
    $region13: #{tpu_custom_call.1} parent=1 // pred_fallthru
      _
    // Predicated region
    $region14: #{tpu_custom_call.1} parent=1 // pred_check
      _
    $region15: #{tpu_custom_call.1} parent=1 // pred_check_branch
      %40 = sbr.rel (0) target = $region17
    $region16: #{tpu_custom_call.1} parent=1 // pred_region
      %41 = dma.done [#allocation11], 256
    $region17: #{tpu_custom_call.1} parent=1 // pred_fallthru
      _
    %p42 = scmp.eq.s32.totalorder 0, 0
    // Predicated region
    $region18: #{tpu_custom_call.1} parent=1 // pred_check
      %p43 = pneg %p42
    $region19: #{tpu_custom_call.1} parent=1 // pred_check_branch
      %45 = sbr.rel (%p43) target = $region21
    $region20: #{tpu_custom_call.1} parent=1 // pred_region
      %46 = vst [vmem:[#allocation2] sm:$0xff] 0.0
      %47 = vst [vmem:[#allocation3] sm:$0xff] 0.0
      %48 = vst [vmem:[#allocation4] sm:$0xff] 0.0
    $region21: #{tpu_custom_call.1} parent=1 // pred_fallthru
      _
    %s49 = sld [smem:[#allocation6]]
    %v50 = vlaneseq
    %v51 = vshrl.u32 %v50, 7
    %v52 = vadd.s32 %v51, 8
    %v53 = vlaneseq
    %v54 = vand.u32 %v53, 127
    %s55 = smul.u32 0, 16
    %v56 = vstv %s55
    %v57 = vadd.s32 %v56, %v51
    %v58 = vadd.s32 %v56, %v52
    %v59 = vmul.u32 %v57, 128
    %v60 = vmul.u32 %v58, 128
    %v61 = vadd.s32 %v59, %v54
    %v62 = vadd.s32 %v60, %v54
    %v63 = vstv %s49
    %vm64 = vcmp.lt.s32.totalorder %v61, %v63
    %vm65 = vcmp.lt.s32.totalorder %v62, %v63
    %v66 = vld [vmem:[#allocation7] sm:$0xff]
    %v67 = vld [vmem:[#allocation7 + $0x8] sm:$0xff]
    %v68 = vsel %vm64, %v66, 0.0
    %v69 = vsel %vm65, %v67, 0.0
    %v70 = vld [vmem:[#allocation10] sm:$0xff]
    %v71 = vld [vmem:[#allocation10 + $0x8] sm:$0xff]
    %v72 = vsel %vm64, %v70, 0.0
    %v73 = vsel %vm65, %v71, 0.0
    %v74 = vand.u32 2147483647, %v68
    %v75 = vand.u32 2147483647, %v69
    %v76 = vsub.f32 0.0, %v74
    %v77 = vsub.f32 0.0, %v75
    %v78 = vmul.f32 %v76, 1.442695
    %v79 = vpow.pop %v78
    %v80 = vmul.f32 %v77, 1.442695
    %v81 = vpow.pop %v80
    %v82 = vadd.f32 %v79, 1.0
    %v83 = vlog2.pop %v82
    %v84 = vmul.f32 %v83, 0.6931472
    %v85 = vmul.f32 -0.5, %v79
    %v86 = vadd.f32 %v85, 1.0
    %v87 = vmul.f32 %v86, %v79
    %v88 = vand.u32 2147483647, %v79
    %vm89 = vcmp.lt.f32.partialorder %v88, 0.0004427343
    %v90 = vsel %vm89, %v87, %v84
    %v91 = vadd.f32 %v81, 1.0
    %v92 = vlog2.pop %v91
    %v93 = vmul.f32 %v92, 0.6931472
    %v94 = vmul.f32 -0.5, %v81
    %v95 = vadd.f32 %v94, 1.0
    %v96 = vmul.f32 %v95, %v81
    %v97 = vand.u32 2147483647, %v81
    %vm98 = vcmp.lt.f32.partialorder %v97, 0.0004427343
    %v99 = vsel %vm98, %v96, %v93
    %v100 = vmin.f32 %v68, 0.0
    %v101 = vmin.f32 %v69, 0.0
    %v102 = vsub.f32 %v100, %v90
    %v103 = vsub.f32 %v101, %v99
    %v104 = vmax.f32 %v68, 0.0
    %v105 = vmax.f32 %v69, 0.0
    %v106 = vsub.f32 0.0, %v104
    %v107 = vsub.f32 0.0, %v105
    %v108 = vsub.f32 %v106, %v90
    %v109 = vsub.f32 %v107, %v99
    %v110 = vmul.f32 %v72, %v102
    %v111 = vmul.f32 %v73, %v103
    %v112 = vsub.f32 1.0, %v72
    %v113 = vsub.f32 1.0, %v73
    %v114 = vmul.f32 %v112, %v108
    %v115 = vmul.f32 %v113, %v109
    %v116 = vsel %vm64, %v114, 0.0
    %v117 = vsel %vm65, %v115, 0.0
    %v118 = vld [vmem:[#allocation2] sm:$0xff]
    %v119 = vadd.f32 %v110, %v111
    %v120 = vadd.f32 %v118, %v119
    %121 = vst [vmem:[#allocation2] sm:$0xff] %v120
    %v122 = vld [vmem:[#allocation3] sm:$0xff]
    %v123 = vadd.f32 %v116, %v117
    %v124 = vadd.f32 %v122, %v123
    %125 = vst [vmem:[#allocation3] sm:$0xff] %v124
    %v126 = vld [vmem:[#allocation4] sm:$0xff]
    %v127 = vadd.f32 %v72, %v73
    %v128 = vadd.f32 %v126, %v127
    %129 = vst [vmem:[#allocation4] sm:$0xff] %v128
    // Predicated region
    $region22: #{tpu_custom_call.1} parent=1 // pred_check
      %p130 = pneg %p42
    $region23: #{tpu_custom_call.1} parent=1 // pred_check_branch
      %132 = sbr.rel (%p130) target = $region25
    $region24: #{tpu_custom_call.1} parent=1 // pred_region
      %s133 = scvt.s32.f32 %s49
      %v134 = vld [vmem:[#allocation2] sm:$0xff]
      %135 = vadd.xlane.f32.xlu0 %v134
      %v136 = vpop.xlane.xlu0 %135
      %v137 = vrot.slane %v136, 4
      %v138 = vadd.f32 %v136, %v137
      %v139 = vrot.slane %v138, 2
      %v140 = vadd.f32 %v138, %v139
      %v141 = vrot.slane %v140, 1
      %v142 = vadd.f32 %v140, %v141
      %s143 = vtos %v142
      %v144 = vld [vmem:[#allocation3] sm:$0xff]
      %145 = vadd.xlane.f32.xlu0 %v144
      %v146 = vpop.xlane.xlu0 %145
      %v147 = vrot.slane %v146, 4
      %v148 = vadd.f32 %v146, %v147
      %v149 = vrot.slane %v148, 2
      %v150 = vadd.f32 %v148, %v149
      %v151 = vrot.slane %v150, 1
      %v152 = vadd.f32 %v150, %v151
      %s153 = vtos %v152
      %v154 = vld [vmem:[#allocation4] sm:$0xff]
      %155 = vadd.xlane.f32.xlu0 %v154
      %v156 = vpop.xlane.xlu0 %155
      %v157 = vrot.slane %v156, 4
      %v158 = vadd.f32 %v156, %v157
      %v159 = vrot.slane %v158, 2
      %v160 = vadd.f32 %v158, %v159
      %v161 = vrot.slane %v160, 1
      %v162 = vadd.f32 %v160, %v161
      %s163 = vtos %v162
      %s164 = sadd.f32 %s163, 1e-10
      %s165 = ssub.f32 %s133, %s163
      %v166 = vstv %s164
      %v167 = vrcp.pop %v166
      %s168 = vtos %v167
      %s169 = smul.f32 %s165, %s168
      %s170 = sadd.f32 %s164, %s165
      %v171 = vstv %s170
      %v172 = vrcp.pop %v171
      %s173 = vtos %v172
      %s174 = smul.f32 %s164, %s173
      %s175 = smul.f32 %s169, %s143
      %s176 = sadd.f32 %s175, %s153
      %s177 = ssub.f32 0.0, %s176
      %v178 = vstv %s133
      %v179 = vrcp.pop %v178
      %s180 = vtos %v179
      %s181 = smul.f32 %s177, %s180
      %s182 = smul.f32 %s174, %s181
      %s183 = scalar_lea.smem [#allocation12], 0
      %184 = sst [smem:[%s183]] %s182
    $region25: #{tpu_custom_call.1} parent=1 // pred_fallthru
      _
    // Predicated region
    $region26: #{tpu_custom_call.1} parent=1 // pred_check
      _
    $region27: #{tpu_custom_call.1} parent=1 // pred_check_branch
      %186 = sbr.rel (0) target = $region29
    $region28: #{tpu_custom_call.1} parent=1 // pred_region
      %s188 = ssub.s32 16, 16
      %189 = vsyncadd [#allocation9], %s188
      %192 = dma.smem_to_hbm [#allocation12], 16, %s3, [#allocation9]
    $region29: #{tpu_custom_call.1} parent=1 // pred_fallthru
      _
    // Predicated region
    $region30: #{tpu_custom_call.1} parent=1 // pred_check
      _
    $region31: #{tpu_custom_call.1} parent=1 // pred_check_branch
      %194 = sbr.rel (0) target = $region33
    $region32: #{tpu_custom_call.1} parent=1 // pred_region
      %195 = dma.done [#allocation9], 16
    $region33: #{tpu_custom_call.1} parent=1 // pred_fallthru
      _
    %196 = sfence
    %197 = vsyncpa [#allocation8], 1
    %198 = vsyncpa [#allocation11], 1
    %199 = vsyncpa [#allocation9], 1

</llo_original>
